<compile_context>
chip_gen: v7x
topology: tpu7x:2x2x1
jax: 0.10.0
libtpu: 0.0.40
codegen_flags: <defaults>
</compile_context>

<pallas_src>
import math

import jax
import jax.numpy as jnp
import numpy as np
from jax.experimental import pallas as pl
from jax.experimental.pallas import tpu as pltpu


def make_decoder_kernel(input_size, latent_size, hidden_size, number_layers):
    """Builds the fused one-step decoder-LSTM kernel (layer chain unrolled)."""
    H, L = hidden_size, number_layers

    def kernel(*refs):
        # inputs : dec (B,1,in), lat (B,lat), hc_prev (L,B,2H),
        #          w_dec0 (in,4H), w_lat0 (lat,4H), w_hh (L,H,4H), b (L,1,4H),
        #          [w_ih (L-1,H,4H) when L > 1]
        # outputs: hc_out (L,B,2H)   packed [h || c], aliased with hc_prev
        if L > 1:
            (dec_ref, lat_ref, hc_prev_ref, w_dec0_ref, w_lat0_ref,
             w_hh_ref, b_ref, w_ih_ref, hc_out_ref) = refs
        else:
            (dec_ref, lat_ref, hc_prev_ref, w_dec0_ref, w_lat0_ref,
             w_hh_ref, b_ref, hc_out_ref) = refs
            w_ih_ref = None

        cdt = w_hh_ref.dtype                 # MXU operand dtype (f32 or bf16)

        dec = dec_ref[:, 0, :].astype(cdt)   # (B, input_size)
        lat = lat_ref[...].astype(cdt)       # (B, latent_size)

        x = None                             # inter-layer activation (stays in vregs)
        for l in range(L):                   # static unroll: L is small
            hc_l = hc_prev_ref[l]            # (B, 2H)
            h_prev = hc_l[:, :H].astype(jnp.float32)
            c_prev = hc_l[:, H:].astype(jnp.float32)

            # gates = x @ W_ih^T + h @ W_hh^T + b, accumulated in f32 on the MXU.
            if l == 0:
                # layer-0 input is [decode || latent]; the concat is folded into
                # two matmuls against the row-split W_ih (no zero-padded rows,
                # no lane-dim concatenate).
                gates = jnp.dot(dec, w_dec0_ref[...],
                                preferred_element_type=jnp.float32)
                gates = gates + jnp.dot(lat, w_lat0_ref[...],
                                        preferred_element_type=jnp.float32)
            else:
                gates = jnp.dot(x, w_ih_ref[l - 1],
                                preferred_element_type=jnp.float32)
            gates = gates + jnp.dot(h_prev.astype(cdt), w_hh_ref[l],
                                    preferred_element_type=jnp.float32)
            gates = gates + b_ref[l].astype(jnp.float32)        # (1,4H) broadcast

            # PyTorch gate order: i, f, g, o.  Gate math stays f32 (v5e-safe).
            # TODO(synk): at production H (multiple of 128) these gate slices are
            # lane-aligned and free; only switch to full-vreg nonlinearity +
            # mask-select if a bundle dump shows XLU filler on the critical path.
            i_g = jax.nn.sigmoid(gates[:, 0 * H:1 * H])
            f_g = jax.nn.sigmoid(gates[:, 1 * H:2 * H])
            g_g = jnp.tanh(gates[:, 2 * H:3 * H])
            o_g = jax.nn.sigmoid(gates[:, 3 * H:4 * H])

            c_new = f_g * c_prev + i_g * g_g
            h_new = o_g * jnp.tanh(c_new)

            # Single packed (B, 2H) store of [h || c] — lane-dense vs. two H-wide
            # masked partial stores.
            hc_out_ref[l] = jnp.concatenate(
                [h_new, c_new], axis=-1).astype(hc_out_ref.dtype)

            # Inter-layer dropout: no-op for a single inference step.
            x = h_new.astype(cdt)

    return kernel


def build_decoder_params(key, input_size, hidden_size, latent_size,
                         number_layers, weight_dtype=jnp.float32):
    """PyTorch-style U(-k, k) init, pre-transposed into the kernel layout.

    Layout (no zero padding — every weight byte streamed from HBM is used):
      w_dec0: (input_size,  4H)  layer-0 W_ih^T rows for the decode inputs
      w_lat0: (latent_size, 4H)  layer-0 W_ih^T rows for the latent inputs
      w_ih  : (L-1, H, 4H)       layers>=1 W_ih^T   (key absent when L == 1)
      w_hh  : (L, H, 4H)         all layers' W_hh^T
      b     : (L, 1, 4H)         b_ih + b_hh (f32)
    weight_dtype=jnp.bfloat16 halves weight HBM traffic on v5e/v6e/v7x
    (the kernel keeps gate math and the cell state in f32).
    """
    H = hidden_size
    d0 = input_size + latent_size
    k = 1.0 / math.sqrt(H)
    w_dec0 = w_lat0 = None
    w_ih_stack, w_hh_stack, b_stack = [], [], []
    for layer in range(number_layers):
        d_in = d0 if layer == 0 else H
        key, k1, k2, k3, k4 = jax.random.split(key, 5)
        w_ih = jax.random.uniform(k1, (4 * H, d_in), jnp.float32, -k, k)
        w_hh = jax.random.uniform(k2, (4 * H, H), jnp.float32, -k, k)
        b_ih = jax.random.uniform(k3, (4 * H,), jnp.float32, -k, k)
        b_hh = jax.random.uniform(k4, (4 * H,), jnp.float32, -k, k)
        w_ih_t = w_ih.T                                    # (d_in, 4H)
        if layer == 0:
            w_dec0 = w_ih_t[:input_size]                   # (input_size, 4H)
            w_lat0 = w_ih_t[input_size:]                   # (latent_size, 4H)
        else:
            w_ih_stack.append(w_ih_t)                      # (H, 4H)
        w_hh_stack.append(w_hh.T)                          # (H, 4H)
        b_stack.append((b_ih + b_hh)[None, :])             # (1, 4H)
    params = {
        "w_dec0": w_dec0.astype(weight_dtype),
        "w_lat0": w_lat0.astype(weight_dtype),
        "w_hh": jnp.stack(w_hh_stack, 0).astype(weight_dtype),   # (L, H, 4H)
        "b": jnp.stack(b_stack, 0).astype(jnp.float32),          # (L, 1, 4H)
    }
    if number_layers > 1:
        params["w_ih"] = jnp.stack(w_ih_stack, 0).astype(weight_dtype)  # (L-1,H,4H)
    return params


def nested_decoder_forward(params, decode_inputs, latent_inputs,
                           previous_state=None, *, hidden_size, number_layers):
    """Pallas implementation of NestedDecoder.forward (one fused pallas_call).

    decode_inputs : (B, 1, input_size)
    latent_inputs : (B, latent_size)
    previous_state: optional (h, c), each (number_layers, B, hidden_size)
    Returns (outputs (B, 1, H), (h_new, c_new) each (L, B, H)).

    Perf note: donate previous_state (jit donate_argnums) in a decode loop so
    the aliased packed state updates in place; batch beams/sequences so the
    matmul M dimension approaches 128-256 (extra rows are ~free — the kernel
    is weight-bandwidth bound).
    """
    B, _, input_size = decode_inputs.shape
    latent_size = latent_inputs.shape[-1]
    H, L = hidden_size, number_layers

    if previous_state is None:
        hc_prev = jnp.zeros((L, B, 2 * H), jnp.float32)
    else:
        h_prev, c_prev = previous_state
        hc_prev = jnp.concatenate([h_prev, c_prev], axis=-1).astype(jnp.float32)

    operands = [decode_inputs, latent_inputs, hc_prev,
                params["w_dec0"], params["w_lat0"], params["w_hh"], params["b"]]
    if L > 1:
        operands.append(params["w_ih"])

    # VMEM budget from the actual resident arrays (grid-less call => single
    # buffered), with headroom for compiler scratch; capped below v7x's 64 MiB
    # physical VMEM so the same kernel runs on v5e/v6e/v7x.
    out_bytes = L * B * 2 * H * 4
    total_bytes = out_bytes + sum(
        math.prod(a.shape) * np.dtype(a.dtype).itemsize for a in operands)
    vmem_limit = int(min(max(4 * total_bytes, 4 << 20), 48 << 20))

    kernel = make_decoder_kernel(input_size, latent_size, H, L)

    hc_new = pl.pallas_call(
        kernel,
        out_shape=jax.ShapeDtypeStruct((L, B, 2 * H), jnp.float32),
        # Packed state aliases in-place (zero-copy when the caller donates it).
        input_output_aliases={2: 0},
        compiler_params=pltpu.CompilerParams(vmem_limit_bytes=vmem_limit),
    )(*operands)

    h_new = hc_new[..., :H]
    c_new = hc_new[..., H:]
    outputs = h_new[L - 1][:, None, :]       # (B, 1, H), sliced in the wrapper
    return outputs, (h_new, c_new)


def _reference_forward(params, decode_inputs, latent_inputs, previous_state,
                       *, hidden_size, number_layers):
    """Pure-JAX reference with identical math (for validation)."""
    H, L = hidden_size, number_layers
    f32 = jnp.float32
    x = jnp.concatenate([decode_inputs[:, 0, :], latent_inputs], -1).astype(f32)
    w_ih0 = jnp.concatenate([params["w_dec0"], params["w_lat0"]], 0).astype(f32)
    h_prev, c_prev = previous_state
    hs, cs = [], []
    for l in range(L):
        w_in = w_ih0 if l == 0 else params["w_ih"][l - 1].astype(f32)
        gates = (x @ w_in
                 + h_prev[l].astype(f32) @ params["w_hh"][l].astype(f32)
                 + params["b"][l])
        i = jax.nn.sigmoid(gates[:, 0 * H:1 * H])
        f = jax.nn.sigmoid(gates[:, 1 * H:2 * H])
        g = jnp.tanh(gates[:, 2 * H:3 * H])
        o = jax.nn.sigmoid(gates[:, 3 * H:4 * H])
        c = f * c_prev[l].astype(f32) + i * g
        h = o * jnp.tanh(c)
        hs.append(h)
        cs.append(c)
        x = h
    return hs[-1][:, None, :], (jnp.stack(hs, 0), jnp.stack(cs, 0))


if __name__ == "__main__":
    batch = 4
    input_size = 8
    latent_size = 8
    hidden_size = 32
    number_layers = 2

    key = jax.random.PRNGKey(0)
    key, kp, kd, kl, kh, kc = jax.random.split(key, 6)

    params = build_decoder_params(kp, input_size, hidden_size, latent_size,
                                  number_layers, weight_dtype=jnp.float32)

    decode_inputs = jax.random.normal(kd, (batch, 1, input_size), jnp.float32)
    latent_inputs = jax.random.normal(kl, (batch, latent_size), jnp.float32)
    prev_h = jax.random.normal(kh, (number_layers, batch, hidden_size), jnp.float32)
    prev_c = jax.random.normal(kc, (number_layers, batch, hidden_size), jnp.float32)

    fwd = jax.jit(nested_decoder_forward,
                  static_argnames=("hidden_size", "number_layers"))
    outputs, (h_state, c_state) = fwd(
        params, decode_inputs, latent_inputs, (prev_h, prev_c),
        hidden_size=hidden_size, number_layers=number_layers)
    jax.block_until_ready((outputs, h_state, c_state))

    assert outputs.shape == (batch, 1, hidden_size)
    assert h_state.shape == (number_layers, batch, hidden_size)
    assert c_state.shape == (number_layers, batch, hidden_size)

    # Validate against a pure-JAX reference (loose tol: MXU vs XLA matmul paths).
    out_ref, (h_ref, c_ref) = _reference_forward(
        params, decode_inputs, latent_inputs, (prev_h, prev_c),
        hidden_size=hidden_size, number_layers=number_layers)
    np.testing.assert_allclose(np.asarray(outputs), np.asarray(out_ref),
                               rtol=2e-2, atol=2e-2)
    np.testing.assert_allclose(np.asarray(h_state), np.asarray(h_ref),
                               rtol=2e-2, atol=2e-2)
    np.testing.assert_allclose(np.asarray(c_state), np.asarray(c_ref),
                               rtol=2e-2, atol=2e-2)

    print("KERNEL_OK")
</pallas_src>

<mosaic_0001>
module attributes {stable_mosaic.version = 11 : i64} {
  func.func @kernel(%arg0: memref<4x1x8xf32, #tpu.memory_space<vmem>>, %arg1: memref<4x8xf32, #tpu.memory_space<vmem>>, %arg2: memref<2x4x64xf32, #tpu.memory_space<vmem>>, %arg3: memref<8x128xf32, #tpu.memory_space<vmem>>, %arg4: memref<8x128xf32, #tpu.memory_space<vmem>>, %arg5: memref<2x32x128xf32, #tpu.memory_space<vmem>>, %arg6: memref<2x1x128xf32, #tpu.memory_space<vmem>>, %arg7: memref<1x32x128xf32, #tpu.memory_space<vmem>>, %arg8: memref<2x4x64xf32, #tpu.memory_space<vmem>>) attributes {dimension_semantics = [], scalar_prefetch = 0 : i64, scratch_operands = 0 : i64, tpu.core_type = #tpu.core_type<tc>} {
    %c0 = arith.constant 0 : index
    %c0_0 = arith.constant 0 : index
    %c0_1 = arith.constant 0 : index
    %0 = vector.load %arg0[%c0, %c0_0, %c0_1] : memref<4x1x8xf32, #tpu.memory_space<vmem>>, vector<4x1x8xf32>
    %1 = vector.shape_cast %0 : vector<4x1x8xf32> to vector<4x8xf32>
    %c0_2 = arith.constant 0 : index
    %c0_3 = arith.constant 0 : index
    %2 = vector.load %arg1[%c0_2, %c0_3] : memref<4x8xf32, #tpu.memory_space<vmem>>, vector<4x8xf32>
    %c0_4 = arith.constant 0 : index
    %c0_5 = arith.constant 0 : index
    %c0_6 = arith.constant 0 : index
    %3 = vector.load %arg2[%c0_4, %c0_5, %c0_6] : memref<2x4x64xf32, #tpu.memory_space<vmem>>, vector<1x4x64xf32>
    %4 = vector.shape_cast %3 : vector<1x4x64xf32> to vector<4x64xf32>
    %5 = vector.extract_strided_slice %4 {offsets = [0, 0], sizes = [4, 32], strides = [1, 1]} : vector<4x64xf32> to vector<4x32xf32>
    %6 = vector.extract_strided_slice %4 {offsets = [0, 32], sizes = [4, 32], strides = [1, 1]} : vector<4x64xf32> to vector<4x32xf32>
    %c0_7 = arith.constant 0 : index
    %c0_8 = arith.constant 0 : index
    %7 = vector.load %arg3[%c0_7, %c0_8] : memref<8x128xf32, #tpu.memory_space<vmem>>, vector<8x128xf32>
    %cst = arith.constant dense<0.000000e+00> : vector<4x128xf32>
    %8 = tpu.matmul %1, %7, %cst {dimension_numbers = #tpu.dot_dimension_numbers<[1], [0], [0], [1], [0, 0, 1, 1], [], []>} : vector<4x8xf32>, vector<8x128xf32>, vector<4x128xf32> -> vector<4x128xf32>
    %c0_9 = arith.constant 0 : index
    %c0_10 = arith.constant 0 : index
    %9 = vector.load %arg4[%c0_9, %c0_10] : memref<8x128xf32, #tpu.memory_space<vmem>>, vector<8x128xf32>
    %cst_11 = arith.constant dense<0.000000e+00> : vector<4x128xf32>
    %10 = tpu.matmul %2, %9, %cst_11 {dimension_numbers = #tpu.dot_dimension_numbers<[1], [0], [0], [1], [0, 0, 1, 1], [], []>} : vector<4x8xf32>, vector<8x128xf32>, vector<4x128xf32> -> vector<4x128xf32>
    %11 = arith.addf %8, %10 : vector<4x128xf32>
    %c0_12 = arith.constant 0 : index
    %c0_13 = arith.constant 0 : index
    %c0_14 = arith.constant 0 : index
    %12 = vector.load %arg5[%c0_12, %c0_13, %c0_14] : memref<2x32x128xf32, #tpu.memory_space<vmem>>, vector<1x32x128xf32>
    %13 = vector.shape_cast %12 : vector<1x32x128xf32> to vector<32x128xf32>
    %cst_15 = arith.constant dense<0.000000e+00> : vector<4x128xf32>
    %14 = tpu.matmul %5, %13, %cst_15 {dimension_numbers = #tpu.dot_dimension_numbers<[1], [0], [0], [1], [0, 0, 1, 1], [], []>} : vector<4x32xf32>, vector<32x128xf32>, vector<4x128xf32> -> vector<4x128xf32>
    %15 = arith.addf %11, %14 : vector<4x128xf32>
    %c0_16 = arith.constant 0 : index
    %c0_17 = arith.constant 0 : index
    %c0_18 = arith.constant 0 : index
    %16 = vector.load %arg6[%c0_16, %c0_17, %c0_18] : memref<2x1x128xf32, #tpu.memory_space<vmem>>, vector<1x1x128xf32>
    %17 = vector.shape_cast %16 : vector<1x1x128xf32> to vector<1x128xf32>
    %18 = vector.broadcast %17 : vector<1x128xf32> to vector<4x128xf32>
    %19 = arith.addf %15, %18 : vector<4x128xf32>
    %20 = vector.extract_strided_slice %19 {offsets = [0, 0], sizes = [4, 32], strides = [1, 1]} : vector<4x128xf32> to vector<4x32xf32>
    %21 = arith.negf %20 : vector<4x32xf32>
    %22 = math.exp %21 : vector<4x32xf32>
    %cst_19 = arith.constant 1.000000e+00 : f32
    %23 = vector.broadcast %cst_19 : f32 to vector<4x32xf32>
    %24 = arith.addf %23, %22 : vector<4x32xf32>
    %25 = arith.divf %23, %24 : vector<4x32xf32>
    %26 = vector.extract_strided_slice %19 {offsets = [0, 32], sizes = [4, 32], strides = [1, 1]} : vector<4x128xf32> to vector<4x32xf32>
    %27 = arith.negf %26 : vector<4x32xf32>
    %28 = math.exp %27 : vector<4x32xf32>
    %cst_20 = arith.constant 1.000000e+00 : f32
    %29 = vector.broadcast %cst_20 : f32 to vector<4x32xf32>
    %30 = arith.addf %29, %28 : vector<4x32xf32>
    %31 = arith.divf %29, %30 : vector<4x32xf32>
    %32 = vector.extract_strided_slice %19 {offsets = [0, 64], sizes = [4, 32], strides = [1, 1]} : vector<4x128xf32> to vector<4x32xf32>
    %33 = math.tanh %32 : vector<4x32xf32>
    %34 = vector.extract_strided_slice %19 {offsets = [0, 96], sizes = [4, 32], strides = [1, 1]} : vector<4x128xf32> to vector<4x32xf32>
    %35 = arith.negf %34 : vector<4x32xf32>
    %36 = math.exp %35 : vector<4x32xf32>
    %cst_21 = arith.constant 1.000000e+00 : f32
    %37 = vector.broadcast %cst_21 : f32 to vector<4x32xf32>
    %38 = arith.addf %37, %36 : vector<4x32xf32>
    %39 = arith.divf %37, %38 : vector<4x32xf32>
    %40 = arith.mulf %31, %6 : vector<4x32xf32>
    %41 = arith.mulf %25, %33 : vector<4x32xf32>
    %42 = arith.addf %40, %41 : vector<4x32xf32>
    %43 = math.tanh %42 : vector<4x32xf32>
    %44 = arith.mulf %39, %43 : vector<4x32xf32>
    %45 = tpu.concatenate %44, %42 in 1 : vector<4x32xf32>, vector<4x32xf32> -> vector<4x64xf32>
    %c0_22 = arith.constant 0 : index
    %c0_23 = arith.constant 0 : index
    %c0_24 = arith.constant 0 : index
    %46 = vector.load %arg8[%c0_22, %c0_23, %c0_24] : memref<2x4x64xf32, #tpu.memory_space<vmem>>, vector<1x4x64xf32>
    %47 = vector.shape_cast %46 : vector<1x4x64xf32> to vector<4x64xf32>
    %48 = vector.shape_cast %45 : vector<4x64xf32> to vector<1x4x64xf32>
    tpu.vector_store %arg8[%c0_22, %c0_23, %c0_24], %48 {strides = array<i32>} : memref<2x4x64xf32, #tpu.memory_space<vmem>>, vector<1x4x64xf32>,
    %c1 = arith.constant 1 : index
    %c0_25 = arith.constant 0 : index
    %c0_26 = arith.constant 0 : index
    %49 = vector.load %arg2[%c1, %c0_25, %c0_26] : memref<2x4x64xf32, #tpu.memory_space<vmem>>, vector<1x4x64xf32>
    %50 = vector.shape_cast %49 : vector<1x4x64xf32> to vector<4x64xf32>
    %51 = vector.extract_strided_slice %50 {offsets = [0, 0], sizes = [4, 32], strides = [1, 1]} : vector<4x64xf32> to vector<4x32xf32>
    %52 = vector.extract_strided_slice %50 {offsets = [0, 32], sizes = [4, 32], strides = [1, 1]} : vector<4x64xf32> to vector<4x32xf32>
    %c0_27 = arith.constant 0 : index
    %c0_28 = arith.constant 0 : index
    %c0_29 = arith.constant 0 : index
    %53 = vector.load %arg7[%c0_27, %c0_28, %c0_29] : memref<1x32x128xf32, #tpu.memory_space<vmem>>, vector<1x32x128xf32>
    %54 = vector.shape_cast %53 : vector<1x32x128xf32> to vector<32x128xf32>
    %cst_30 = arith.constant dense<0.000000e+00> : vector<4x128xf32>
    %55 = tpu.matmul %44, %54, %cst_30 {dimension_numbers = #tpu.dot_dimension_numbers<[1], [0], [0], [1], [0, 0, 1, 1], [], []>} : vector<4x32xf32>, vector<32x128xf32>, vector<4x128xf32> -> vector<4x128xf32>
    %c1_31 = arith.constant 1 : index
    %c0_32 = arith.constant 0 : index
    %c0_33 = arith.constant 0 : index
    %56 = vector.load %arg5[%c1_31, %c0_32, %c0_33] : memref<2x32x128xf32, #tpu.memory_space<vmem>>, vector<1x32x128xf32>
    %57 = vector.shape_cast %56 : vector<1x32x128xf32> to vector<32x128xf32>
    %cst_34 = arith.constant dense<0.000000e+00> : vector<4x128xf32>
    %58 = tpu.matmul %51, %57, %cst_34 {dimension_numbers = #tpu.dot_dimension_numbers<[1], [0], [0], [1], [0, 0, 1, 1], [], []>} : vector<4x32xf32>, vector<32x128xf32>, vector<4x128xf32> -> vector<4x128xf32>
    %59 = arith.addf %55, %58 : vector<4x128xf32>
    %c1_35 = arith.constant 1 : index
    %c0_36 = arith.constant 0 : index
    %c0_37 = arith.constant 0 : index
    %60 = vector.load %arg6[%c1_35, %c0_36, %c0_37] : memref<2x1x128xf32, #tpu.memory_space<vmem>>, vector<1x1x128xf32>
    %61 = vector.shape_cast %60 : vector<1x1x128xf32> to vector<1x128xf32>
    %62 = vector.broadcast %61 : vector<1x128xf32> to vector<4x128xf32>
    %63 = arith.addf %59, %62 : vector<4x128xf32>
    %64 = vector.extract_strided_slice %63 {offsets = [0, 0], sizes = [4, 32], strides = [1, 1]} : vector<4x128xf32> to vector<4x32xf32>
    %65 = arith.negf %64 : vector<4x32xf32>
    %66 = math.exp %65 : vector<4x32xf32>
    %cst_38 = arith.constant 1.000000e+00 : f32
    %67 = vector.broadcast %cst_38 : f32 to vector<4x32xf32>
    %68 = arith.addf %67, %66 : vector<4x32xf32>
    %69 = arith.divf %67, %68 : vector<4x32xf32>
    %70 = vector.extract_strided_slice %63 {offsets = [0, 32], sizes = [4, 32], strides = [1, 1]} : vector<4x128xf32> to vector<4x32xf32>
    %71 = arith.negf %70 : vector<4x32xf32>
    %72 = math.exp %71 : vector<4x32xf32>
    %cst_39 = arith.constant 1.000000e+00 : f32
    %73 = vector.broadcast %cst_39 : f32 to vector<4x32xf32>
    %74 = arith.addf %73, %72 : vector<4x32xf32>
    %75 = arith.divf %73, %74 : vector<4x32xf32>
    %76 = vector.extract_strided_slice %63 {offsets = [0, 64], sizes = [4, 32], strides = [1, 1]} : vector<4x128xf32> to vector<4x32xf32>
    %77 = math.tanh %76 : vector<4x32xf32>
    %78 = vector.extract_strided_slice %63 {offsets = [0, 96], sizes = [4, 32], strides = [1, 1]} : vector<4x128xf32> to vector<4x32xf32>
    %79 = arith.negf %78 : vector<4x32xf32>
    %80 = math.exp %79 : vector<4x32xf32>
    %cst_40 = arith.constant 1.000000e+00 : f32
    %81 = vector.broadcast %cst_40 : f32 to vector<4x32xf32>
    %82 = arith.addf %81, %80 : vector<4x32xf32>
    %83 = arith.divf %81, %82 : vector<4x32xf32>
    %84 = arith.mulf %75, %52 : vector<4x32xf32>
    %85 = arith.mulf %69, %77 : vector<4x32xf32>
    %86 = arith.addf %84, %85 : vector<4x32xf32>
    %87 = math.tanh %86 : vector<4x32xf32>
    %88 = arith.mulf %83, %87 : vector<4x32xf32>
    %89 = tpu.concatenate %88, %86 in 1 : vector<4x32xf32>, vector<4x32xf32> -> vector<4x64xf32>
    %c1_41 = arith.constant 1 : index
    %c0_42 = arith.constant 0 : index
    %c0_43 = arith.constant 0 : index
    %90 = vector.load %arg8[%c1_41, %c0_42, %c0_43] : memref<2x4x64xf32, #tpu.memory_space<vmem>>, vector<1x4x64xf32>
    %91 = vector.shape_cast %90 : vector<1x4x64xf32> to vector<4x64xf32>
    %92 = vector.shape_cast %89 : vector<4x64xf32> to vector<1x4x64xf32>
    tpu.vector_store %arg8[%c1_41, %c0_42, %c0_43], %92 {strides = array<i32>} : memref<2x4x64xf32, #tpu.memory_space<vmem>>, vector<1x4x64xf32>,
    return
  }
}

</mosaic_0001>

<llo_original>
// kernel: nested_decoder_forward.1
$region0: #{nested_decoder_forward.1}
  #allocation0 [shape = 'u32[]', space=smem, size = 0x4, offset = 0x4, fixed_abs, tag = 'smem constant byte address 0x4 - core index']
  #allocation1 [shape = 'u32[144,128]{1,0:T(1,128)}', space=vmem, size = 0x12000, scoped, tag = 'internal scratch']
  %s0 = inlined_call_operand.vmem [shape: f32[4,1,8], index: 0, kind: input, shape index: {}]
  %s1 = inlined_call_operand.vmem [shape: f32[4,8], index: 1, kind: input, shape index: {}]
  %s2 = inlined_call_operand.vmem [shape: f32[2,4,64], index: 2, kind: input, shape index: {}, may-alias: {2,8}]
  %s3 = inlined_call_operand.vmem [shape: f32[8,128], index: 3, kind: input, shape index: {}]
  %s4 = inlined_call_operand.vmem [shape: f32[8,128], index: 4, kind: input, shape index: {}]
  %s5 = inlined_call_operand.hbm [shape: f32[2,32,128], index: 5, kind: input, shape index: {}]
  %s6 = inlined_call_operand.vmem [shape: f32[2,1,128], index: 6, kind: input, shape index: {}]
  %s7 = inlined_call_operand.hbm [shape: f32[1,32,128], index: 7, kind: input, shape index: {}]
  %s8 = inlined_call_operand.vmem [shape: f32[2,4,64], index: 8, kind: output, shape index: {}, may-alias: {2,8}]
  %s9 = sld [smem:[#allocation0]]
  $region50: #{nested_decoder_forward.1} parent=0
    _
  %s11 = ssub.s32 1, %s9
  %s12 = scalar_select 0, %s11, %s9
  $region1: #{nested_decoder_forward.1} parent=0
    #allocation2 [shape = 'u8[32768]{0}', space=vmem, size = 0x8000, scoped, tag = 'input window, operand 5, single buffered']
    #allocation3 [shape = 's32[1]{0}', space=sflag, size = 0x4, scoped, tag = 'scoped memory for nested_decoder_forward.1']
    #allocation4 [shape = 'u8[16384]{0}', space=vmem, size = 0x4000, scoped, tag = 'input window, operand 7, single buffered']
    #allocation5 [shape = 's32[1]{0}', space=sflag, size = 0x4, scoped, tag = 'scoped memory for nested_decoder_forward.1']
    %13 = vsyncpa [#allocation3], 0
    %14 = vsyncpa [#allocation5], 0
    // Predicated region
    $region2: #{nested_decoder_forward.1} parent=1 // pred_check
      _
    $region3: #{nested_decoder_forward.1} parent=1 // pred_check_branch
      %16 = sbr.rel (0) target = $region5
    $region4: #{nested_decoder_forward.1} parent=1 // pred_region
      _
    $region5: #{nested_decoder_forward.1} parent=1 // pred_fallthru
      _
    // Predicated region
    $region6: #{nested_decoder_forward.1} parent=1 // pred_check
      _
    $region7: #{nested_decoder_forward.1} parent=1 // pred_check_branch
      %18 = sbr.rel (0) target = $region9
    $region8: #{nested_decoder_forward.1} parent=1 // pred_region
      _
    $region9: #{nested_decoder_forward.1} parent=1 // pred_fallthru
      _
    // Predicated region
    $region10: #{nested_decoder_forward.1} parent=1 // pred_check
      _
    $region11: #{nested_decoder_forward.1} parent=1 // pred_check_branch
      %20 = sbr.rel (0) target = $region13
    $region12: #{nested_decoder_forward.1} parent=1 // pred_region
      _
    $region13: #{nested_decoder_forward.1} parent=1 // pred_fallthru
      _
    // Predicated region
    $region14: #{nested_decoder_forward.1} parent=1 // pred_check
      _
    $region15: #{nested_decoder_forward.1} parent=1 // pred_check_branch
      %22 = sbr.rel (0) target = $region17
    $region16: #{nested_decoder_forward.1} parent=1 // pred_region
      _
    $region17: #{nested_decoder_forward.1} parent=1 // pred_fallthru
      _
    // Predicated region
    $region18: #{nested_decoder_forward.1} parent=1 // pred_check
      _
    $region19: #{nested_decoder_forward.1} parent=1 // pred_check_branch
      %24 = sbr.rel (0) target = $region21
    $region20: #{nested_decoder_forward.1} parent=1 // pred_region
      _
    $region21: #{nested_decoder_forward.1} parent=1 // pred_fallthru
      _
    // Predicated region
    $region22: #{nested_decoder_forward.1} parent=1 // pred_check
      _
    $region23: #{nested_decoder_forward.1} parent=1 // pred_check_branch
      %26 = sbr.rel (0) target = $region25
    $region24: #{nested_decoder_forward.1} parent=1 // pred_region
      %s28 = ssub.s32 1024, 1024
      %29 = vsyncadd [#allocation3], %s28
      %s30 = sshll.u32 [#allocation2], 4
      %s31 = int_to_ptr.vmem [resolvable:$true] %s30
      %36 = dma.hbm_to_vmem [thread:$0]  %s5, 1024, %s31, [#allocation3], 128, 128, 8
    $region25: #{nested_decoder_forward.1} parent=1 // pred_fallthru
      _
    // Predicated region
    $region26: #{nested_decoder_forward.1} parent=1 // pred_check
      _
    $region27: #{nested_decoder_forward.1} parent=1 // pred_check_branch
      %38 = sbr.rel (0) target = $region29
    $region28: #{nested_decoder_forward.1} parent=1 // pred_region
      _
    $region29: #{nested_decoder_forward.1} parent=1 // pred_fallthru
      _
    // Predicated region
    $region30: #{nested_decoder_forward.1} parent=1 // pred_check
      _
    $region31: #{nested_decoder_forward.1} parent=1 // pred_check_branch
      %40 = sbr.rel (0) target = $region33
    $region32: #{nested_decoder_forward.1} parent=1 // pred_region
      %s42 = ssub.s32 512, 512
      %43 = vsyncadd [#allocation5], %s42
      %s44 = sshll.u32 [#allocation4], 4
      %s45 = int_to_ptr.vmem [resolvable:$true] %s44
      %50 = dma.hbm_to_vmem [thread:$0]  %s7, 512, %s45, [#allocation5], 128, 128, 8
    $region33: #{nested_decoder_forward.1} parent=1 // pred_fallthru
      _
    // Predicated region
    $region34: #{nested_decoder_forward.1} parent=1 // pred_check
      _
    $region35: #{nested_decoder_forward.1} parent=1 // pred_check_branch
      %52 = sbr.rel (0) target = $region37
    $region36: #{nested_decoder_forward.1} parent=1 // pred_region
      %53 = dma.done [#allocation3], 1024
    $region37: #{nested_decoder_forward.1} parent=1 // pred_fallthru
      _
    // Predicated region
    $region38: #{nested_decoder_forward.1} parent=1 // pred_check
      _
    $region39: #{nested_decoder_forward.1} parent=1 // pred_check_branch
      %55 = sbr.rel (0) target = $region41
    $region40: #{nested_decoder_forward.1} parent=1 // pred_region
      %56 = dma.done [#allocation5], 512
    $region41: #{nested_decoder_forward.1} parent=1 // pred_fallthru
      _
    %v57 = vld [vmem:[%s0] sm:$0x1]
    %v58 = vld [vmem:[%s0 + $0x1] sm:$0x1]
    %v59 = vld [vmem:[%s0 + $0x2] sm:$0x1]
    %v60 = vld [vmem:[%s0 + $0x3] sm:$0x1]
    %v61 = vld [vmem:[%s1] sm:$0xf]
    %v62 = vld [vmem:[%s2] sm:$0xf]
    %v63 = vld [vmem:[%s3] sm:$0xff]
    %v64 = vld [vmem:[%s4] sm:$0xff]
    %vm65 = vcmask 64512
    %v67 = vsel %vm65, %v61, 0
    %69 = vmatprep.subr.mxu0 0.0
    %70 = vmatpush1.msra.mxu0 %v64
    %71 = vmatprep.subr.mxu0 0.0
    %72 = vmatpush1.msra.mxu0 0.0
    %73 = vmatprep.subr.mxu0 0.0
    %74 = vmatpush1.msra.mxu0 0.0
    %75 = vmatprep.subr.mxu0 0.0
    %76 = vmatpush1.msra.mxu0 0.0
    %77 = vmatprep.subr.mxu0 0.0
    %78 = vmatpush1.msra.mxu0 0.0
    %79 = vmatprep.subr.mxu0 0.0
    %80 = vmatpush1.msra.mxu0 0.0
    %81 = vmatprep.subr.mxu0 0.0
    %82 = vmatpush1.msra.mxu0 0.0
    %83 = vmatprep.subr.mxu0 0.0
    %84 = vmatpush1.msra.mxu0 0.0
    %85 = vmatprep.subr.mxu0 0.0
    %86 = vmatpush1.msra.mxu0 0.0
    %87 = vmatprep.subr.mxu0 0.0
    %88 = vmatpush1.msra.mxu0 0.0
    %89 = vmatprep.subr.mxu0 0.0
    %90 = vmatpush1.msra.mxu0 0.0
    %91 = vmatprep.subr.mxu0 0.0
    %92 = vmatpush1.msra.mxu0 0.0
    %93 = vmatprep.subr.mxu0 0.0
    %94 = vmatpush1.msra.mxu0 0.0
    %95 = vmatprep.subr.mxu0 0.0
    %96 = vmatpush1.msra.mxu0 0.0
    %97 = vmatprep.subr.mxu0 0.0
    %98 = vmatpush1.msra.mxu0 0.0
    %99 = vmatprep.subr.mxu0 0.0
    %100 = vmatpush1.msra.mxu0 0.0
    %101 = vmatprep.subr.mxu0 0.0
    %102 = vmatpush1.msra.mxu0 0.0
    %103 = vmatprep.subr.mxu0 0.0
    %104 = vmatpush1.msra.mxu0 0.0
    %105 = vmatprep.subr.mxu0 0.0
    %106 = vmatpush1.msra.mxu0 0.0
    %107 = vmatprep.subr.mxu0 0.0
    %108 = vmatpush1.msra.mxu0 0.0
    %109 = vmatprep.subr.mxu0 0.0
    %110 = vmatpush1.msra.mxu0 0.0
    %111 = vmatprep.subr.mxu0 0.0
    %112 = vmatpush1.msra.mxu0 0.0
    %113 = vmatprep.subr.mxu0 0.0
    %114 = vmatpush1.msra.mxu0 0.0
    %115 = vmatprep.subr.mxu0 0.0
    %116 = vmatpush1.msra.mxu0 0.0
    %117 = vmatprep.subr.mxu0 0.0
    %118 = vmatpush1.msra.mxu0 0.0
    %119 = vmatprep.subr.mxu0 0.0
    %120 = vmatpush1.msra.mxu0 0.0
    %121 = vmatprep.subr.mxu0 0.0
    %122 = vmatpush1.msra.mxu0 0.0
    %123 = vmatprep.subr.mxu0 0.0
    %124 = vmatpush1.msra.mxu0 0.0
    %125 = vmatprep.subr.mxu0 0.0
    %126 = vmatpush1.msra.mxu0 0.0
    %127 = vmatprep.subr.mxu0 0.0
    %128 = vmatpush1.msra.mxu0 0.0
    %129 = vmatprep.subr.mxu0 0.0
    %130 = vmatpush1.msra.mxu0 0.0
    %131 = vmatprep.subr.mxu0 0.0
    %132 = vmatpush1.msra.mxu0 0.0
    %133 = vmatprep.mubr.f32.mxu0 0.0
    %134 = vmatmul.mubr.f32.gmra.mrb[0].mxu0 %v67
    %v135 = vpop.f32.mrb[0].mxu0
    %v136 = vadd.f32 0.0, %v135
    %v137 = vpop.f32.mrb[0].mxu0
    %138 = vdwg.mxu0
    %v143 = vcombine.low %v57, %v58
    %v144 = vcombine.low %v59, %v60
    %v146 = vunpack.c.l.s4 1966171168
    %v147 = vunpack.c.0.s8 %v146
    %v148 = vlaneseq
    %v149 = vshrl.u32 %v148, 7
    %v150 = vsub.s32 %v147, %v149
    %v151 = vrot.slane %v143, %v150
    %v153 = vunpack.c.l.s4 1966171168
    %v154 = vunpack.c.0.s8 %v153
    %v155 = vlaneseq
    %v156 = vshrl.u32 %v155, 7
    %v157 = vsub.s32 %v154, %v156
    %v158 = vrot.slane %v144, %v157
    %v159 = vcombine.low %v151, %v158
    %v161 = vunpack.c.l.s4 1966171168
    %v162 = vunpack.c.0.s8 %v161
    %v163 = vlaneseq
    %v164 = vshrl.u32 %v163, 7
    %v165 = vsub.s32 %v162, %v164
    %v166 = vrot.slane %v159, %v165
    %v167 = vsel %vm65, %v166, 0
    %169 = vmatprep.subr.mxu0 0.0
    %170 = vmatpush1.msra.mxu0 %v63
    %171 = vmatprep.subr.mxu0 0.0
    %172 = vmatpush1.msra.mxu0 0.0
    %173 = vmatprep.subr.mxu0 0.0
    %174 = vmatpush1.msra.mxu0 0.0
    %175 = vmatprep.subr.mxu0 0.0
    %176 = vmatpush1.msra.mxu0 0.0
    %177 = vmatprep.subr.mxu0 0.0
    %178 = vmatpush1.msra.mxu0 0.0
    %179 = vmatprep.subr.mxu0 0.0
    %180 = vmatpush1.msra.mxu0 0.0
    %181 = vmatprep.subr.mxu0 0.0
    %182 = vmatpush1.msra.mxu0 0.0
    %183 = vmatprep.subr.mxu0 0.0
    %184 = vmatpush1.msra.mxu0 0.0
    %185 = vmatprep.subr.mxu0 0.0
    %186 = vmatpush1.msra.mxu0 0.0
    %187 = vmatprep.subr.mxu0 0.0
    %188 = vmatpush1.msra.mxu0 0.0
    %189 = vmatprep.subr.mxu0 0.0
    %190 = vmatpush1.msra.mxu0 0.0
    %191 = vmatprep.subr.mxu0 0.0
    %192 = vmatpush1.msra.mxu0 0.0
    %193 = vmatprep.subr.mxu0 0.0
    %194 = vmatpush1.msra.mxu0 0.0
    %195 = vmatprep.subr.mxu0 0.0
    %196 = vmatpush1.msra.mxu0 0.0
    %197 = vmatprep.subr.mxu0 0.0
    %198 = vmatpush1.msra.mxu0 0.0
    %199 = vmatprep.subr.mxu0 0.0
    %200 = vmatpush1.msra.mxu0 0.0
    %201 = vmatprep.subr.mxu0 0.0
    %202 = vmatpush1.msra.mxu0 0.0
    %203 = vmatprep.subr.mxu0 0.0
    %204 = vmatpush1.msra.mxu0 0.0
    %205 = vmatprep.subr.mxu0 0.0
    %206 = vmatpush1.msra.mxu0 0.0
    %207 = vmatprep.subr.mxu0 0.0
    %208 = vmatpush1.msra.mxu0 0.0
    %209 = vmatprep.subr.mxu0 0.0
    %210 = vmatpush1.msra.mxu0 0.0
    %211 = vmatprep.subr.mxu0 0.0
    %212 = vmatpush1.msra.mxu0 0.0
    %213 = vmatprep.subr.mxu0 0.0
    %214 = vmatpush1.msra.mxu0 0.0
    %215 = vmatprep.subr.mxu0 0.0
    %216 = vmatpush1.msra.mxu0 0.0
    %217 = vmatprep.subr.mxu0 0.0
    %218 = vmatpush1.msra.mxu0 0.0
    %219 = vmatprep.subr.mxu0 0.0
    %220 = vmatpush1.msra.mxu0 0.0
    %221 = vmatprep.subr.mxu0 0.0
    %222 = vmatpush1.msra.mxu0 0.0
    %223 = vmatprep.subr.mxu0 0.0
    %224 = vmatpush1.msra.mxu0 0.0
    %225 = vmatprep.subr.mxu0 0.0
    %226 = vmatpush1.msra.mxu0 0.0
    %227 = vmatprep.subr.mxu0 0.0
    %228 = vmatpush1.msra.mxu0 0.0
    %229 = vmatprep.subr.mxu0 0.0
    %230 = vmatpush1.msra.mxu0 0.0
    %231 = vmatprep.subr.mxu0 0.0
    %232 = vmatpush1.msra.mxu0 0.0
    %233 = vmatprep.mubr.f32.mxu0 0.0
    %234 = vmatmul.mubr.f32.gmra.mrb[0].mxu0 %v167
    %v235 = vpop.f32.mrb[0].mxu0
    %v236 = vadd.f32 %v136, %v235
    %v237 = vpop.f32.mrb[0].mxu0
    %238 = vdwg.mxu0
    %v239 = vld [vmem:[#allocation2] sm:$0xff]
    %v240 = vld [vmem:[#allocation2 + $0x8] sm:$0xff]
    %v241 = vld [vmem:[#allocation2 + $0x10] sm:$0xff]
    %v242 = vld [vmem:[#allocation2 + $0x18] sm:$0xff]
    %vm243 = vcmask 261120
    %v245 = vsel %vm243, %v62, 0
    %247 = vmatprep.subr.mxu0 0.0
    %248 = vmatpush1.msra.mxu0 %v239
    %249 = vmatprep.subr.mxu0 0.0
    %250 = vmatpush1.msra.mxu0 %v240
    %251 = vmatprep.subr.mxu0 0.0
    %252 = vmatpush1.msra.mxu0 %v241
    %253 = vmatprep.subr.mxu0 0.0
    %254 = vmatpush1.msra.mxu0 %v242
    %255 = vmatprep.subr.mxu0 0.0
    %256 = vmatpush1.msra.mxu0 0.0
    %257 = vmatprep.subr.mxu0 0.0
    %258 = vmatpush1.msra.mxu0 0.0
    %259 = vmatprep.subr.mxu0 0.0
    %260 = vmatpush1.msra.mxu0 0.0
    %261 = vmatprep.subr.mxu0 0.0
    %262 = vmatpush1.msra.mxu0 0.0
    %263 = vmatprep.subr.mxu0 0.0
    %264 = vmatpush1.msra.mxu0 0.0
    %265 = vmatprep.subr.mxu0 0.0
    %266 = vmatpush1.msra.mxu0 0.0
    %267 = vmatprep.subr.mxu0 0.0
    %268 = vmatpush1.msra.mxu0 0.0
    %269 = vmatprep.subr.mxu0 0.0
    %270 = vmatpush1.msra.mxu0 0.0
    %271 = vmatprep.subr.mxu0 0.0
    %272 = vmatpush1.msra.mxu0 0.0
    %273 = vmatprep.subr.mxu0 0.0
    %274 = vmatpush1.msra.mxu0 0.0
    %275 = vmatprep.subr.mxu0 0.0
    %276 = vmatpush1.msra.mxu0 0.0
    %277 = vmatprep.subr.mxu0 0.0
    %278 = vmatpush1.msra.mxu0 0.0
    %279 = vmatprep.subr.mxu0 0.0
    %280 = vmatpush1.msra.mxu0 0.0
    %281 = vmatprep.subr.mxu0 0.0
    %282 = vmatpush1.msra.mxu0 0.0
    %283 = vmatprep.subr.mxu0 0.0
    %284 = vmatpush1.msra.mxu0 0.0
    %285 = vmatprep.subr.mxu0 0.0
    %286 = vmatpush1.msra.mxu0 0.0
    %287 = vmatprep.subr.mxu0 0.0
    %288 = vmatpush1.msra.mxu0 0.0
    %289 = vmatprep.subr.mxu0 0.0
    %290 = vmatpush1.msra.mxu0 0.0
    %291 = vmatprep.subr.mxu0 0.0
    %292 = vmatpush1.msra.mxu0 0.0
    %293 = vmatprep.subr.mxu0 0.0
    %294 = vmatpush1.msra.mxu0 0.0
    %295 = vmatprep.subr.mxu0 0.0
    %296 = vmatpush1.msra.mxu0 0.0
    %297 = vmatprep.subr.mxu0 0.0
    %298 = vmatpush1.msra.mxu0 0.0
    %299 = vmatprep.subr.mxu0 0.0
    %300 = vmatpush1.msra.mxu0 0.0
    %301 = vmatprep.subr.mxu0 0.0
    %302 = vmatpush1.msra.mxu0 0.0
    %303 = vmatprep.subr.mxu0 0.0
    %304 = vmatpush1.msra.mxu0 0.0
    %305 = vmatprep.subr.mxu0 0.0
    %306 = vmatpush1.msra.mxu0 0.0
    %307 = vmatprep.subr.mxu0 0.0
    %308 = vmatpush1.msra.mxu0 0.0
    %309 = vmatprep.subr.mxu0 0.0
    %310 = vmatpush1.msra.mxu0 0.0
    %311 = vmatprep.mubr.f32.mxu0 0.0
    %312 = vmatmul.mubr.f32.gmra.mrb[0].mxu0 %v245
    %v313 = vpop.f32.mrb[0].mxu0
    %v314 = vadd.f32 0.0, %v313
    %v315 = vpop.f32.mrb[0].mxu0
    %316 = vdwg.mxu0
    %v317 = vadd.f32 %v236, %v314
    %v318 = vld [vmem:[%s6] sm:$0x1]
    %v320 = vlaneseq
    %v321 = vshrl.u32 %v320, 7
    %v322 = vsub.s32 0, %v321
    %v323 = vrot.slane %v318, %v322
    %v325 = vadd.f32 %v317, %v323
    %v326 = vxor.u32 %v325, 2147483648
    %v327 = vmul.f32 %v326, 1.442695
    %v328 = vpow.pop %v327
    %v329 = vadd.f32 %v328, 1.0
    %v330 = vrcp.pop %v329
    %v331 = vmul.f32 1.0, %v330
    %v332 = vtanh.pop %v325
    %v333 = vmul.f32 %v331, %v62
    %335 = vrot.lane.b32.xlu0 %v332, 64
    %v336 = vpop.permute.xlu0 %335
    %v338 = vmul.f32 %v331, %v336
    %340 = vrot.lane.b32.xlu0 %v338, 32
    %v341 = vpop.permute.xlu0 %340
    %v343 = vadd.f32 %v333, %v341
    %v344 = vtanh.pop %v343
    %346 = vrot.lane.b32.xlu0 %v344, 64
    %v347 = vpop.permute.xlu0 %346
    %v349 = vmul.f32 %v331, %v347
    %351 = vrot.lane.b32.xlu0 %v349, 32
    %v352 = vpop.permute.xlu0 %351
    %v354 = vsel %vm243, %v352, %v343
    %vm355 = vcmask 519168
    %356 = vst.msk [vmem:[%s8] sm:$0xf] %vm355, %v354
    %s357 = scalar_lea.vmem %s2, 4
    %v358 = vld [vmem:[%s357] sm:$0xf]
    %v359 = vld [vmem:[#allocation4] sm:$0xff]
    %v360 = vld [vmem:[#allocation4 + $0x8] sm:$0xff]
    %v361 = vld [vmem:[#allocation4 + $0x10] sm:$0xff]
    %v362 = vld [vmem:[#allocation4 + $0x18] sm:$0xff]
    %s363 = scalar_lea.vmem [#allocation2], 32
    %v364 = vld [vmem:[%s363] sm:$0xff]
    %v365 = vld [vmem:[%s363 + $0x8] sm:$0xff]
    %v366 = vld [vmem:[%s363 + $0x10] sm:$0xff]
    %v367 = vld [vmem:[%s363 + $0x18] sm:$0xff]
    %v369 = vsel %vm243, %v358, 0
    %371 = vmatprep.subr.mxu0 0.0
    %372 = vmatpush1.msra.mxu0 %v364
    %373 = vmatprep.subr.mxu0 0.0
    %374 = vmatpush1.msra.mxu0 %v365
    %375 = vmatprep.subr.mxu0 0.0
    %376 = vmatpush1.msra.mxu0 %v366
    %377 = vmatprep.subr.mxu0 0.0
    %378 = vmatpush1.msra.mxu0 %v367
    %379 = vmatprep.subr.mxu0 0.0
    %380 = vmatpush1.msra.mxu0 0.0
    %381 = vmatprep.subr.mxu0 0.0
    %382 = vmatpush1.msra.mxu0 0.0
    %383 = vmatprep.subr.mxu0 0.0
    %384 = vmatpush1.msra.mxu0 0.0
    %385 = vmatprep.subr.mxu0 0.0
    %386 = vmatpush1.msra.mxu0 0.0
    %387 = vmatprep.subr.mxu0 0.0
    %388 = vmatpush1.msra.mxu0 0.0
    %389 = vmatprep.subr.mxu0 0.0
    %390 = vmatpush1.msra.mxu0 0.0
    %391 = vmatprep.subr.mxu0 0.0
    %392 = vmatpush1.msra.mxu0 0.0
    %393 = vmatprep.subr.mxu0 0.0
    %394 = vmatpush1.msra.mxu0 0.0
    %395 = vmatprep.subr.mxu0 0.0
    %396 = vmatpush1.msra.mxu0 0.0
    %397 = vmatprep.subr.mxu0 0.0
    %398 = vmatpush1.msra.mxu0 0.0
    %399 = vmatprep.subr.mxu0 0.0
    %400 = vmatpush1.msra.mxu0 0.0
    %401 = vmatprep.subr.mxu0 0.0
    %402 = vmatpush1.msra.mxu0 0.0
    %403 = vmatprep.subr.mxu0 0.0
    %404 = vmatpush1.msra.mxu0 0.0
    %405 = vmatprep.subr.mxu0 0.0
    %406 = vmatpush1.msra.mxu0 0.0
    %407 = vmatprep.subr.mxu0 0.0
    %408 = vmatpush1.msra.mxu0 0.0
    %409 = vmatprep.subr.mxu0 0.0
    %410 = vmatpush1.msra.mxu0 0.0
    %411 = vmatprep.subr.mxu0 0.0
    %412 = vmatpush1.msra.mxu0 0.0
    %413 = vmatprep.subr.mxu0 0.0
    %414 = vmatpush1.msra.mxu0 0.0
    %415 = vmatprep.subr.mxu0 0.0
    %416 = vmatpush1.msra.mxu0 0.0
    %417 = vmatprep.subr.mxu0 0.0
    %418 = vmatpush1.msra.mxu0 0.0
    %419 = vmatprep.subr.mxu0 0.0
    %420 = vmatpush1.msra.mxu0 0.0
    %421 = vmatprep.subr.mxu0 0.0
    %422 = vmatpush1.msra.mxu0 0.0
    %423 = vmatprep.subr.mxu0 0.0
    %424 = vmatpush1.msra.mxu0 0.0
    %425 = vmatprep.subr.mxu0 0.0
    %426 = vmatpush1.msra.mxu0 0.0
    %427 = vmatprep.subr.mxu0 0.0
    %428 = vmatpush1.msra.mxu0 0.0
    %429 = vmatprep.subr.mxu0 0.0
    %430 = vmatpush1.msra.mxu0 0.0
    %431 = vmatprep.subr.mxu0 0.0
    %432 = vmatpush1.msra.mxu0 0.0
    %433 = vmatprep.subr.mxu0 0.0
    %434 = vmatpush1.msra.mxu0 0.0
    %435 = vmatprep.mubr.f32.mxu0 0.0
    %436 = vmatmul.mubr.f32.gmra.mrb[0].mxu0 %v369
    %v437 = vpop.f32.mrb[0].mxu0
    %v438 = vadd.f32 0.0, %v437
    %v439 = vpop.f32.mrb[0].mxu0
    %440 = vdwg.mxu0
    %v441 = vsel %vm243, %v352, 0
    %443 = vmatprep.subr.mxu0 0.0
    %444 = vmatpush1.msra.mxu0 %v359
    %445 = vmatprep.subr.mxu0 0.0
    %446 = vmatpush1.msra.mxu0 %v360
    %447 = vmatprep.subr.mxu0 0.0
    %448 = vmatpush1.msra.mxu0 %v361
    %449 = vmatprep.subr.mxu0 0.0
    %450 = vmatpush1.msra.mxu0 %v362
    %451 = vmatprep.subr.mxu0 0.0
    %452 = vmatpush1.msra.mxu0 0.0
    %453 = vmatprep.subr.mxu0 0.0
    %454 = vmatpush1.msra.mxu0 0.0
    %455 = vmatprep.subr.mxu0 0.0
    %456 = vmatpush1.msra.mxu0 0.0
    %457 = vmatprep.subr.mxu0 0.0
    %458 = vmatpush1.msra.mxu0 0.0
    %459 = vmatprep.subr.mxu0 0.0
    %460 = vmatpush1.msra.mxu0 0.0
    %461 = vmatprep.subr.mxu0 0.0
    %462 = vmatpush1.msra.mxu0 0.0
    %463 = vmatprep.subr.mxu0 0.0
    %464 = vmatpush1.msra.mxu0 0.0
    %465 = vmatprep.subr.mxu0 0.0
    %466 = vmatpush1.msra.mxu0 0.0
    %467 = vmatprep.subr.mxu0 0.0
    %468 = vmatpush1.msra.mxu0 0.0
    %469 = vmatprep.subr.mxu0 0.0
    %470 = vmatpush1.msra.mxu0 0.0
    %471 = vmatprep.subr.mxu0 0.0
    %472 = vmatpush1.msra.mxu0 0.0
    %473 = vmatprep.subr.mxu0 0.0
    %474 = vmatpush1.msra.mxu0 0.0
    %475 = vmatprep.subr.mxu0 0.0
    %476 = vmatpush1.msra.mxu0 0.0
    %477 = vmatprep.subr.mxu0 0.0
    %478 = vmatpush1.msra.mxu0 0.0
    %479 = vmatprep.subr.mxu0 0.0
    %480 = vmatpush1.msra.mxu0 0.0
    %481 = vmatprep.subr.mxu0 0.0
    %482 = vmatpush1.msra.mxu0 0.0
    %483 = vmatprep.subr.mxu0 0.0
    %484 = vmatpush1.msra.mxu0 0.0
    %485 = vmatprep.subr.mxu0 0.0
    %486 = vmatpush1.msra.mxu0 0.0
    %487 = vmatprep.subr.mxu0 0.0
    %488 = vmatpush1.msra.mxu0 0.0
    %489 = vmatprep.subr.mxu0 0.0
    %490 = vmatpush1.msra.mxu0 0.0
    %491 = vmatprep.subr.mxu0 0.0
    %492 = vmatpush1.msra.mxu0 0.0
    %493 = vmatprep.subr.mxu0 0.0
    %494 = vmatpush1.msra.mxu0 0.0
    %495 = vmatprep.subr.mxu0 0.0
    %496 = vmatpush1.msra.mxu0 0.0
    %497 = vmatprep.subr.mxu0 0.0
    %498 = vmatpush1.msra.mxu0 0.0
    %499 = vmatprep.subr.mxu0 0.0
    %500 = vmatpush1.msra.mxu0 0.0
    %501 = vmatprep.subr.mxu0 0.0
    %502 = vmatpush1.msra.mxu0 0.0
    %503 = vmatprep.subr.mxu0 0.0
    %504 = vmatpush1.msra.mxu0 0.0
    %505 = vmatprep.subr.mxu0 0.0
    %506 = vmatpush1.msra.mxu0 0.0
    %507 = vmatprep.mubr.f32.mxu0 0.0
    %508 = vmatmul.mubr.f32.gmra.mrb[0].mxu0 %v441
    %v509 = vpop.f32.mrb[0].mxu0
    %v510 = vadd.f32 %v438, %v509
    %v511 = vpop.f32.mrb[0].mxu0
    %512 = vdwg.mxu0
    %s513 = scalar_lea.vmem %s6, 1
    %v514 = vld [vmem:[%s513] sm:$0x1]
    %v516 = vlaneseq
    %v517 = vshrl.u32 %v516, 7
    %v518 = vsub.s32 0, %v517
    %v519 = vrot.slane %v514, %v518
    %v521 = vadd.f32 %v510, %v519
    %v522 = vxor.u32 %v521, 2147483648
    %v523 = vmul.f32 %v522, 1.442695
    %v524 = vpow.pop %v523
    %v525 = vadd.f32 %v524, 1.0
    %v526 = vrcp.pop %v525
    %v527 = vmul.f32 1.0, %v526
    %v528 = vtanh.pop %v521
    %v529 = vmul.f32 %v527, %v358
    %531 = vrot.lane.b32.xlu0 %v528, 64
    %v532 = vpop.permute.xlu0 %531
    %v534 = vmul.f32 %v527, %v532
    %536 = vrot.lane.b32.xlu0 %v534, 32
    %v537 = vpop.permute.xlu0 %536
    %v539 = vadd.f32 %v529, %v537
    %v540 = vtanh.pop %v539
    %542 = vrot.lane.b32.xlu0 %v540, 64
    %v543 = vpop.permute.xlu0 %542
    %v545 = vmul.f32 %v527, %v543
    %547 = vrot.lane.b32.xlu0 %v545, 32
    %v548 = vpop.permute.xlu0 %547
    %v550 = vsel %vm243, %v548, %v539
    %s551 = scalar_lea.vmem %s8, 4
    %552 = vst.msk [vmem:[%s551] sm:$0xf] %vm355, %v550
    // Predicated region
    $region42: #{nested_decoder_forward.1} parent=1 // pred_check
      _
    $region43: #{nested_decoder_forward.1} parent=1 // pred_check_branch
      %554 = sbr.rel (0) target = $region45
    $region44: #{nested_decoder_forward.1} parent=1 // pred_region
      _
    $region45: #{nested_decoder_forward.1} parent=1 // pred_fallthru
      _
    // Predicated region
    $region46: #{nested_decoder_forward.1} parent=1 // pred_check
      _
    $region47: #{nested_decoder_forward.1} parent=1 // pred_check_branch
      %556 = sbr.rel (0) target = $region49
    $region48: #{nested_decoder_forward.1} parent=1 // pred_region
      _
    $region49: #{nested_decoder_forward.1} parent=1 // pred_fallthru
      _
    %557 = vsyncpa [#allocation3], 1
    %558 = vsyncpa [#allocation5], 1

</llo_original>
